<compile_context>
chip_gen: v6e
topology: v6e:2x2x1
jax: 0.10.0
libtpu: 0.0.40
codegen_flags: <defaults>
</compile_context>

<pallas_src>
import functools

import jax
import jax.numpy as jnp
from jax.experimental import pallas as pl
from jax.experimental.pallas import tpu as pltpu


# True (unpadded) layer sizes of the PyTorch MLP.
LAYER_SIZES = (10, 100, 500, 100, 50, 1)
N_LAYERS = len(LAYER_SIZES) - 1          # 5 linear layers
OUT_FEATURES = LAYER_SIZES[-1]           # 1 (this kernel is specialized for output_size == 1)


def _round_up(n, m):
    return ((n + m - 1) // m) * m


# Lane-dense padded widths for the matmul chain (input + 4 hidden outputs).
PADDED_WIDTHS = tuple(_round_up(s, 128) for s in LAYER_SIZES[:-1])   # (128,128,512,128,128)

# Only split the grid for megacore once each TensorCore would get >= this many rows.
_MIN_MEGACORE_ROWS = 256


# ----------------------------------------------------------------------------
# Pallas kernel: fused 5-layer MLP for one batch tile
# ----------------------------------------------------------------------------
def mlp_kernel(x_ref,
               w1_ref, b1_ref, w2_ref, b2_ref, w3_ref, b3_ref, w4_ref, b4_ref,
               w5_ref, b5_ref,
               o_ref):
    # Hidden layers 1-4: bf16 MXU matmuls (f32 accumulate), f32 bias-add + ReLU on VPU.
    h = x_ref[...]                                                       # (TB, 128) bf16
    h = jnp.maximum(
        jnp.dot(h, w1_ref[...], preferred_element_type=jnp.float32) + b1_ref[...], 0.0)
    # TODO(synk): nn.Dropout(p=0.1) is identity in eval mode; training-time masking not implemented.
    h = jnp.maximum(
        jnp.dot(h.astype(jnp.bfloat16), w2_ref[...],
                preferred_element_type=jnp.float32) + b2_ref[...], 0.0)
    h = jnp.maximum(
        jnp.dot(h.astype(jnp.bfloat16), w3_ref[...],
                preferred_element_type=jnp.float32) + b3_ref[...], 0.0)
    h = jnp.maximum(
        jnp.dot(h.astype(jnp.bfloat16), w4_ref[...],
                preferred_element_type=jnp.float32) + b4_ref[...], 0.0)
    # Output layer Linear(50, 1): f32 VPU multiply + lane reduce -> narrow (TB, 1) store
    # (~128x less HBM writeback than a 128-lane-padded matmul output).
    y = jnp.sum(h * w5_ref[...], axis=-1, keepdims=True) + b5_ref[...]   # (TB, 1) f32
    o_ref[...] = y.astype(o_ref.dtype)


# ----------------------------------------------------------------------------
# One-time parameter preparation (padding + bf16 cast), reused across calls
# ----------------------------------------------------------------------------
def prepare_params(params):
    """Pad + cast the 5 (w, b) pairs once; reuse the returned tuple for every forward."""
    assert len(params) == N_LAYERS
    prepared = []
    for li in range(N_LAYERS - 1):                        # hidden layers 1-4
        w, b = params[li]
        fin, fout = LAYER_SIZES[li], LAYER_SIZES[li + 1]
        fin_p, fout_p = PADDED_WIDTHS[li], PADDED_WIDTHS[li + 1]
        w_p = jnp.pad(jnp.asarray(w, jnp.float32), ((0, fin_p - fin), (0, fout_p - fout)))
        b_p = jnp.pad(jnp.asarray(b, jnp.float32).reshape(1, fout),
                      ((0, 0), (0, fout_p - fout)))
        prepared += [w_p.astype(jnp.bfloat16), b_p]       # bf16 weight, f32 bias
    # Output layer kept in f32, stored as a (1, 128) row for the VPU mul + lane reduce.
    w5, b5 = params[-1]
    fin, fin_p = LAYER_SIZES[-2], PADDED_WIDTHS[-1]
    w5_row = jnp.asarray(w5, jnp.float32).reshape(fin, OUT_FEATURES)[:, 0].reshape(1, fin)
    w5_row = jnp.pad(w5_row, ((0, 0), (0, fin_p - fin)))
    b5_p = jnp.asarray(b5, jnp.float32).reshape(1, OUT_FEATURES)
    prepared += [w5_row, b5_p]
    return tuple(prepared)


# ----------------------------------------------------------------------------
# Batch tiling: <= ~8 padded rows per tile, >= 2 grid steps when worth splitting
# ----------------------------------------------------------------------------
def _choose_batch_tiling(batch, batch_tile):
    b8 = _round_up(max(batch, 8), 8)
    n_tiles = -(-b8 // batch_tile)                        # cdiv
    if n_tiles == 1 and b8 >= _MIN_MEGACORE_ROWS:
        n_tiles = 2                                       # let both v7x TensorCores work
    tb = _round_up(-(-b8 // n_tiles), 8)
    return tb, tb * n_tiles, n_tiles


# ----------------------------------------------------------------------------
# Wrapper: pad x, build specs, pallas_call
# ----------------------------------------------------------------------------
@functools.partial(jax.jit, static_argnames=("batch_tile",))
def mlp_forward(x, prepared_params, *, batch_tile=2048):
    """x: (B, 10) float.  prepared_params: output of prepare_params()."""
    B, fin = x.shape
    fin_p = PADDED_WIDTHS[0]
    tb, B_pad, n_tiles = _choose_batch_tiling(B, batch_tile)

    # Per-call work: pad x to (B_pad, 128) and cast to bf16 (zero padding is exact).
    x_p = jnp.pad(x.astype(jnp.bfloat16), ((0, B_pad - B), (0, fin_p - fin)))

    in_specs = [pl.BlockSpec((tb, fin_p), lambda i: (i, 0))]
    # Weights / biases: constant index_map -> DMA'd once and kept VMEM-resident.
    # (pl.Buffered(1) single-buffering would shave <1 MiB more VMEM; marginal, skipped.)
    for li in range(N_LAYERS - 1):
        fi, fo = PADDED_WIDTHS[li], PADDED_WIDTHS[li + 1]
        in_specs.append(pl.BlockSpec((fi, fo), lambda i: (0, 0)))   # bf16 weight
        in_specs.append(pl.BlockSpec((1, fo), lambda i: (0, 0)))    # f32 bias
    in_specs.append(pl.BlockSpec((1, PADDED_WIDTHS[-1]), lambda i: (0, 0)))   # w5 row (f32)
    in_specs.append(pl.BlockSpec((1, OUT_FEATURES), lambda i: (0, 0)))        # b5 (f32)
    out_spec = pl.BlockSpec((tb, OUT_FEATURES), lambda i: (i, 0))

    flops = 2 * B_pad * sum(PADDED_WIDTHS[i] * PADDED_WIDTHS[i + 1]
                            for i in range(N_LAYERS - 1))
    flops += 2 * B_pad * PADDED_WIDTHS[-1]
    bytes_accessed = (
        2 * B_pad * fin_p                                        # x (bf16)
        + 4 * B_pad * OUT_FEATURES                               # out (f32)
        + 2 * sum(PADDED_WIDTHS[i] * PADDED_WIDTHS[i + 1] for i in range(N_LAYERS - 1))
        + 4 * sum(PADDED_WIDTHS[i + 1] for i in range(N_LAYERS - 1))
        + 4 * (PADDED_WIDTHS[-1] + OUT_FEATURES))

    out_padded = pl.pallas_call(
        mlp_kernel,
        out_shape=jax.ShapeDtypeStruct((B_pad, OUT_FEATURES), jnp.float32),
        grid=(n_tiles,),
        in_specs=in_specs,
        out_specs=out_spec,
        compiler_params=pltpu.CompilerParams(
            dimension_semantics=("parallel",),          # megacore sharding on v7x
            vmem_limit_bytes=32 * 1024 * 1024,          # explicit: overrides v5e's 16 MiB default
        ),
        cost_estimate=pl.CostEstimate(
            flops=flops, transcendentals=0, bytes_accessed=bytes_accessed),
    )(x_p, *prepared_params)

    return out_padded[:B, :OUT_FEATURES]


# ----------------------------------------------------------------------------
# Pure-JAX reference mirroring the kernel's precision (dropout = identity at eval)
# ----------------------------------------------------------------------------
def mlp_reference(x, params):
    """bf16 matmuls with f32 accumulation for the 4 hidden layers; f32 for the final Linear."""
    h = x.astype(jnp.float32)
    for i, (w, b) in enumerate(params):
        w = jnp.asarray(w)
        b = jnp.asarray(b)
        if i < N_LAYERS - 1:
            h = jnp.dot(h.astype(jnp.bfloat16), w.astype(jnp.bfloat16),
                        preferred_element_type=jnp.float32) + b.astype(jnp.float32)
            h = jnp.maximum(h, 0.0)
        else:
            h = h @ w.astype(jnp.float32) + b.astype(jnp.float32)
    return h


if __name__ == "__main__":
    batch = 16
    input_features = LAYER_SIZES[0]   # 10
    output_size = LAYER_SIZES[-1]     # 1

    key = jax.random.PRNGKey(0)
    kx, *kps = jax.random.split(key, 1 + 2 * N_LAYERS)

    x = jax.random.normal(kx, (batch, input_features), dtype=jnp.float32)

    # Deterministic torch-style Linear init: uniform(+/- 1/sqrt(fan_in)).
    params = []
    for li in range(N_LAYERS):
        fin, fout = LAYER_SIZES[li], LAYER_SIZES[li + 1]
        bound = 1.0 / float(fin) ** 0.5
        w = jax.random.uniform(kps[2 * li], (fin, fout), jnp.float32,
                               minval=-bound, maxval=bound)
        b = jax.random.uniform(kps[2 * li + 1], (fout,), jnp.float32,
                               minval=-bound, maxval=bound)
        params.append((w, b))

    prepared = prepare_params(params)     # pad/cast once, reuse across forward calls
    y = mlp_forward(x, prepared)
    y = jax.block_until_ready(y)

    y_ref = mlp_reference(x, params)
    assert y.shape == (batch, output_size), y.shape
    # bf16 MXU matmuls -> compare against the same-precision reference (tolerance per review).
    assert jnp.allclose(y, y_ref, atol=1e-2, rtol=1e-2), "mismatch vs reference"

    print("KERNEL_OK")
</pallas_src>

<mosaic_0001>
module attributes {stable_mosaic.version = 11 : i64} {
  func.func @mlp_kernel(%arg0: i32, %arg1: memref<16x128xbf16, #tpu.memory_space<vmem>>, %arg2: memref<128x128xbf16, #tpu.memory_space<vmem>>, %arg3: memref<1x128xf32, #tpu.memory_space<vmem>>, %arg4: memref<128x512xbf16, #tpu.memory_space<vmem>>, %arg5: memref<1x512xf32, #tpu.memory_space<vmem>>, %arg6: memref<512x128xbf16, #tpu.memory_space<vmem>>, %arg7: memref<1x128xf32, #tpu.memory_space<vmem>>, %arg8: memref<128x128xbf16, #tpu.memory_space<vmem>>, %arg9: memref<1x128xf32, #tpu.memory_space<vmem>>, %arg10: memref<1x128xf32, #tpu.memory_space<vmem>>, %arg11: memref<1x1xf32, #tpu.memory_space<vmem>>, %arg12: memref<16x1xf32, #tpu.memory_space<vmem>>) attributes {dimension_semantics = [#tpu.dimension_semantics<parallel>], iteration_bounds = array<i64: 1>, scalar_prefetch = 0 : i64, scratch_operands = 0 : i64, tpu.core_type = #tpu.core_type<tc>, window_params = [{transform_indices = @transform_0, window_bounds = array<i64: 16, 128>}, {pipeline_mode = #tpu.pipeline_mode<synchronous>, transform_indices = @transform_1, window_bounds = array<i64: 128, 128>}, {pipeline_mode = #tpu.pipeline_mode<synchronous>, transform_indices = @transform_2, window_bounds = array<i64: 1, 128>}, {pipeline_mode = #tpu.pipeline_mode<synchronous>, transform_indices = @transform_3, window_bounds = array<i64: 128, 512>}, {pipeline_mode = #tpu.pipeline_mode<synchronous>, transform_indices = @transform_4, window_bounds = array<i64: 1, 512>}, {pipeline_mode = #tpu.pipeline_mode<synchronous>, transform_indices = @transform_5, window_bounds = array<i64: 512, 128>}, {pipeline_mode = #tpu.pipeline_mode<synchronous>, transform_indices = @transform_6, window_bounds = array<i64: 1, 128>}, {pipeline_mode = #tpu.pipeline_mode<synchronous>, transform_indices = @transform_7, window_bounds = array<i64: 128, 128>}, {pipeline_mode = #tpu.pipeline_mode<synchronous>, transform_indices = @transform_8, window_bounds = array<i64: 1, 128>}, {pipeline_mode = #tpu.pipeline_mode<synchronous>, transform_indices = @transform_9, window_bounds = array<i64: 1, 128>}, {pipeline_mode = #tpu.pipeline_mode<synchronous>, transform_indices = @transform_10, window_bounds = array<i64: 1, 1>}, {transform_indices = @transform_11, window_bounds = array<i64: 16, 1>}]} {
    %c0 = arith.constant 0 : index
    %c0_0 = arith.constant 0 : index
    %0 = vector.load %arg1[%c0, %c0_0] : memref<16x128xbf16, #tpu.memory_space<vmem>>, vector<16x128xbf16>
    %c0_1 = arith.constant 0 : index
    %c0_2 = arith.constant 0 : index
    %1 = vector.load %arg2[%c0_1, %c0_2] : memref<128x128xbf16, #tpu.memory_space<vmem>>, vector<128x128xbf16>
    %cst = arith.constant dense<0.000000e+00> : vector<16x128xf32>
    %2 = tpu.matmul %0, %1, %cst {dimension_numbers = #tpu.dot_dimension_numbers<[1], [0], [0], [1], [0, 0, 1, 1], [], []>} : vector<16x128xbf16>, vector<128x128xbf16>, vector<16x128xf32> -> vector<16x128xf32>
    %c0_3 = arith.constant 0 : index
    %c0_4 = arith.constant 0 : index
    %3 = vector.load %arg3[%c0_3, %c0_4] : memref<1x128xf32, #tpu.memory_space<vmem>>, vector<1x128xf32>
    %4 = vector.broadcast %3 : vector<1x128xf32> to vector<16x128xf32>
    %5 = arith.addf %2, %4 : vector<16x128xf32>
    %cst_5 = arith.constant 0.000000e+00 : f32
    %6 = vector.broadcast %cst_5 : f32 to vector<16x128xf32>
    %7 = arith.maximumf %5, %6 : vector<16x128xf32>
    %8 = arith.truncf %7 : vector<16x128xf32> to vector<16x128xbf16>
    %c0_6 = arith.constant 0 : index
    %c0_7 = arith.constant 0 : index
    %9 = vector.load %arg4[%c0_6, %c0_7] : memref<128x512xbf16, #tpu.memory_space<vmem>>, vector<128x512xbf16>
    %cst_8 = arith.constant dense<0.000000e+00> : vector<16x512xf32>
    %10 = tpu.matmul %8, %9, %cst_8 {dimension_numbers = #tpu.dot_dimension_numbers<[1], [0], [0], [1], [0, 0, 1, 1], [], []>} : vector<16x128xbf16>, vector<128x512xbf16>, vector<16x512xf32> -> vector<16x512xf32>
    %c0_9 = arith.constant 0 : index
    %c0_10 = arith.constant 0 : index
    %11 = vector.load %arg5[%c0_9, %c0_10] : memref<1x512xf32, #tpu.memory_space<vmem>>, vector<1x512xf32>
    %12 = vector.broadcast %11 : vector<1x512xf32> to vector<16x512xf32>
    %13 = arith.addf %10, %12 : vector<16x512xf32>
    %cst_11 = arith.constant 0.000000e+00 : f32
    %14 = vector.broadcast %cst_11 : f32 to vector<16x512xf32>
    %15 = arith.maximumf %13, %14 : vector<16x512xf32>
    %16 = arith.truncf %15 : vector<16x512xf32> to vector<16x512xbf16>
    %c0_12 = arith.constant 0 : index
    %c0_13 = arith.constant 0 : index
    %17 = vector.load %arg6[%c0_12, %c0_13] : memref<512x128xbf16, #tpu.memory_space<vmem>>, vector<512x128xbf16>
    %cst_14 = arith.constant dense<0.000000e+00> : vector<16x128xf32>
    %18 = tpu.matmul %16, %17, %cst_14 {dimension_numbers = #tpu.dot_dimension_numbers<[1], [0], [0], [1], [0, 0, 1, 1], [], []>} : vector<16x512xbf16>, vector<512x128xbf16>, vector<16x128xf32> -> vector<16x128xf32>
    %c0_15 = arith.constant 0 : index
    %c0_16 = arith.constant 0 : index
    %19 = vector.load %arg7[%c0_15, %c0_16] : memref<1x128xf32, #tpu.memory_space<vmem>>, vector<1x128xf32>
    %20 = vector.broadcast %19 : vector<1x128xf32> to vector<16x128xf32>
    %21 = arith.addf %18, %20 : vector<16x128xf32>
    %cst_17 = arith.constant 0.000000e+00 : f32
    %22 = vector.broadcast %cst_17 : f32 to vector<16x128xf32>
    %23 = arith.maximumf %21, %22 : vector<16x128xf32>
    %24 = arith.truncf %23 : vector<16x128xf32> to vector<16x128xbf16>
    %c0_18 = arith.constant 0 : index
    %c0_19 = arith.constant 0 : index
    %25 = vector.load %arg8[%c0_18, %c0_19] : memref<128x128xbf16, #tpu.memory_space<vmem>>, vector<128x128xbf16>
    %cst_20 = arith.constant dense<0.000000e+00> : vector<16x128xf32>
    %26 = tpu.matmul %24, %25, %cst_20 {dimension_numbers = #tpu.dot_dimension_numbers<[1], [0], [0], [1], [0, 0, 1, 1], [], []>} : vector<16x128xbf16>, vector<128x128xbf16>, vector<16x128xf32> -> vector<16x128xf32>
    %c0_21 = arith.constant 0 : index
    %c0_22 = arith.constant 0 : index
    %27 = vector.load %arg9[%c0_21, %c0_22] : memref<1x128xf32, #tpu.memory_space<vmem>>, vector<1x128xf32>
    %28 = vector.broadcast %27 : vector<1x128xf32> to vector<16x128xf32>
    %29 = arith.addf %26, %28 : vector<16x128xf32>
    %cst_23 = arith.constant 0.000000e+00 : f32
    %30 = vector.broadcast %cst_23 : f32 to vector<16x128xf32>
    %31 = arith.maximumf %29, %30 : vector<16x128xf32>
    %c0_24 = arith.constant 0 : index
    %c0_25 = arith.constant 0 : index
    %32 = vector.load %arg10[%c0_24, %c0_25] : memref<1x128xf32, #tpu.memory_space<vmem>>, vector<1x128xf32>
    %33 = vector.broadcast %32 : vector<1x128xf32> to vector<16x128xf32>
    %34 = arith.mulf %31, %33 : vector<16x128xf32>
    %cst_26 = arith.constant dense<0.000000e+00> : vector<16xf32>
    %35 = vector.multi_reduction <add>, %34, %cst_26 [1] : vector<16x128xf32> to vector<16xf32>
    %36 = vector.shape_cast %35 : vector<16xf32> to vector<16x1xf32>
    %c0_27 = arith.constant 0 : index
    %c0_28 = arith.constant 0 : index
    %37 = vector.load %arg11[%c0_27, %c0_28] : memref<1x1xf32, #tpu.memory_space<vmem>>, vector<1x1xf32>
    %38 = vector.broadcast %37 : vector<1x1xf32> to vector<16x1xf32>
    %39 = arith.addf %36, %38 : vector<16x1xf32>
    %c0_29 = arith.constant 0 : index
    %c0_30 = arith.constant 0 : index
    %40 = vector.load %arg12[%c0_29, %c0_30] : memref<16x1xf32, #tpu.memory_space<vmem>>, vector<16x1xf32>
    tpu.vector_store %arg12[%c0_29, %c0_30], %39 {strides = array<i32>} : memref<16x1xf32, #tpu.memory_space<vmem>>, vector<16x1xf32>,
    return
  }
  func.func @transform_0(%arg0: i32) -> (i32, i32) {
    %c0_i32 = arith.constant 0 : i32
    %c0_i32_0 = arith.constant 0 : i32
    return %arg0, %c0_i32 : i32, i32
  }
  func.func @transform_1(%arg0: i32) -> (i32, i32) {
    %c0_i32 = arith.constant 0 : i32
    %c0_i32_0 = arith.constant 0 : i32
    %c0_i32_1 = arith.constant 0 : i32
    return %c0_i32, %c0_i32_0 : i32, i32
  }
  func.func @transform_2(%arg0: i32) -> (i32, i32) {
    %c0_i32 = arith.constant 0 : i32
    %c0_i32_0 = arith.constant 0 : i32
    %c0_i32_1 = arith.constant 0 : i32
    return %c0_i32, %c0_i32_0 : i32, i32
  }
  func.func @transform_3(%arg0: i32) -> (i32, i32) {
    %c0_i32 = arith.constant 0 : i32
    %c0_i32_0 = arith.constant 0 : i32
    %c0_i32_1 = arith.constant 0 : i32
    return %c0_i32, %c0_i32_0 : i32, i32
  }
  func.func @transform_4(%arg0: i32) -> (i32, i32) {
    %c0_i32 = arith.constant 0 : i32
    %c0_i32_0 = arith.constant 0 : i32
    %c0_i32_1 = arith.constant 0 : i32
    return %c0_i32, %c0_i32_0 : i32, i32
  }
  func.func @transform_5(%arg0: i32) -> (i32, i32) {
    %c0_i32 = arith.constant 0 : i32
    %c0_i32_0 = arith.constant 0 : i32
    %c0_i32_1 = arith.constant 0 : i32
    return %c0_i32, %c0_i32_0 : i32, i32
  }
  func.func @transform_6(%arg0: i32) -> (i32, i32) {
    %c0_i32 = arith.constant 0 : i32
    %c0_i32_0 = arith.constant 0 : i32
    %c0_i32_1 = arith.constant 0 : i32
    return %c0_i32, %c0_i32_0 : i32, i32
  }
  func.func @transform_7(%arg0: i32) -> (i32, i32) {
    %c0_i32 = arith.constant 0 : i32
    %c0_i32_0 = arith.constant 0 : i32
    %c0_i32_1 = arith.constant 0 : i32
    return %c0_i32, %c0_i32_0 : i32, i32
  }
  func.func @transform_8(%arg0: i32) -> (i32, i32) {
    %c0_i32 = arith.constant 0 : i32
    %c0_i32_0 = arith.constant 0 : i32
    %c0_i32_1 = arith.constant 0 : i32
    return %c0_i32, %c0_i32_0 : i32, i32
  }
  func.func @transform_9(%arg0: i32) -> (i32, i32) {
    %c0_i32 = arith.constant 0 : i32
    %c0_i32_0 = arith.constant 0 : i32
    %c0_i32_1 = arith.constant 0 : i32
    return %c0_i32, %c0_i32_0 : i32, i32
  }
  func.func @transform_10(%arg0: i32) -> (i32, i32) {
    %c0_i32 = arith.constant 0 : i32
    %c0_i32_0 = arith.constant 0 : i32
    %c0_i32_1 = arith.constant 0 : i32
    return %c0_i32, %c0_i32_0 : i32, i32
  }
  func.func @transform_11(%arg0: i32) -> (i32, i32) {
    %c0_i32 = arith.constant 0 : i32
    %c0_i32_0 = arith.constant 0 : i32
    return %arg0, %c0_i32 : i32, i32
  }
}

</mosaic_0001>

<llo_original>
// kernel: mlp_forward.1
$region0: #{mlp_forward.1}
  #allocation0 [shape = 'u32[]', space=smem, size = 0x4, offset = 0x4, fixed_abs, tag = 'smem constant byte address 0x4 - core index']
  #allocation1 [shape = 'u32[144,128]{1,0:T(1,128)}', space=vmem, size = 0x12000, scoped, tag = 'internal scratch']
  #allocation2 [shape = 'f32[1,1]{1,0:T(1,128)S(1)}', space=vmem, size = 0x200, scoped, tag = 'scoped memory for mlp_forward.1']
  %s0 = inlined_call_operand.vmem [shape: bf16[16,128], index: 0, kind: input, shape index: {}]
  %s1 = inlined_call_operand.hbm [shape: bf16[128,128], index: 1, kind: input, shape index: {}]
  %s2 = inlined_call_operand.vmem [shape: f32[1,128], index: 2, kind: input, shape index: {}]
  %s3 = inlined_call_operand.hbm [shape: bf16[128,512], index: 3, kind: input, shape index: {}]
  %s4 = inlined_call_operand.vmem [shape: f32[1,512], index: 4, kind: input, shape index: {}]
  %s5 = inlined_call_operand.hbm [shape: bf16[512,128], index: 5, kind: input, shape index: {}]
  %s6 = inlined_call_operand.vmem [shape: f32[1,128], index: 6, kind: input, shape index: {}]
  %s7 = inlined_call_operand.hbm [shape: bf16[128,128], index: 7, kind: input, shape index: {}]
  %s8 = inlined_call_operand.vmem [shape: f32[1,128], index: 8, kind: input, shape index: {}]
  %s9 = inlined_call_operand.vmem [shape: f32[1,128], index: 9, kind: input, shape index: {}]
  %s10 = inlined_call_operand.<no memory space> [shape: f32[1,1], index: 10, kind: input, shape index: {}]
  %s11 = inlined_call_operand.vmem [shape: f32[16,1], index: 11, kind: output, shape index: {}]
  %s12 = sld [smem:[#allocation0]]
  $region70: #{mlp_forward.1} parent=0
    _
  %s14 = ssub.s32 1, %s12
  %s15 = scalar_select 0, %s14, %s12
  %v16 = vstv %s10
  %17 = vst [vmem:[#allocation2] sm:$0x1] %v16
  $region1: #{mlp_forward.1} parent=0
    #allocation3 [shape = 'u8[32768]{0}', space=vmem, size = 0x8000, scoped, tag = 'input window, operand 1, single buffered']
    #allocation4 [shape = 's32[1]{0}', space=sflag, size = 0x4, scoped, tag = 'scoped memory for mlp_forward.1']
    #allocation5 [shape = 'u8[131072]{0}', space=vmem, size = 0x20000, scoped, tag = 'input window, operand 3, single buffered']
    #allocation6 [shape = 's32[1]{0}', space=sflag, size = 0x4, scoped, tag = 'scoped memory for mlp_forward.1']
    #allocation7 [shape = 'u8[131072]{0}', space=vmem, size = 0x20000, scoped, tag = 'input window, operand 5, single buffered']
    #allocation8 [shape = 'u8[32768]{0}', space=vmem, size = 0x8000, scoped, tag = 'input window, operand 7, single buffered']
    #allocation9 [shape = 's32[1]{0}', space=sflag, size = 0x4, scoped, tag = 'scoped memory for mlp_forward.1']
    %18 = vsyncpa [#allocation4], 0
    %19 = vsyncpa [#allocation6], 0
    %20 = vsyncpa [#allocation9], 0
    // Predicated region
    $region2: #{mlp_forward.1} parent=1 // pred_check
      _
    $region3: #{mlp_forward.1} parent=1 // pred_check_branch
      %22 = sbr.rel (0) target = $region5
    $region4: #{mlp_forward.1} parent=1 // pred_region
      _
    $region5: #{mlp_forward.1} parent=1 // pred_fallthru
      _
    // Predicated region
    $region6: #{mlp_forward.1} parent=1 // pred_check
      _
    $region7: #{mlp_forward.1} parent=1 // pred_check_branch
      %24 = sbr.rel (0) target = $region9
    $region8: #{mlp_forward.1} parent=1 // pred_region
      %s26 = ssub.s32 1024, 1024
      %27 = vsyncadd [#allocation4], %s26
      %s28 = sshll.u32 [#allocation3], 4
      %s29 = int_to_ptr.vmem [resolvable:$true] %s28
      %34 = dma.hbm_to_vmem [thread:$0]  %s1, 1024, %s29, [#allocation4], 64, 64, 4
    $region9: #{mlp_forward.1} parent=1 // pred_fallthru
      _
    // Predicated region
    $region10: #{mlp_forward.1} parent=1 // pred_check
      _
    $region11: #{mlp_forward.1} parent=1 // pred_check_branch
      %36 = sbr.rel (0) target = $region13
    $region12: #{mlp_forward.1} parent=1 // pred_region
      _
    $region13: #{mlp_forward.1} parent=1 // pred_fallthru
      _
    // Predicated region
    $region14: #{mlp_forward.1} parent=1 // pred_check
      _
    $region15: #{mlp_forward.1} parent=1 // pred_check_branch
      %38 = sbr.rel (0) target = $region17
    $region16: #{mlp_forward.1} parent=1 // pred_region
      %s40 = ssub.s32 4096, 4096
      %41 = vsyncadd [#allocation6], %s40
      %s42 = sshll.u32 [#allocation5], 4
      %s43 = int_to_ptr.vmem [resolvable:$true] %s42
      %48 = dma.hbm_to_vmem [thread:$0]  %s3, 4096, %s43, [#allocation6], 256, 256, 16
    $region17: #{mlp_forward.1} parent=1 // pred_fallthru
      _
    // Predicated region
    $region18: #{mlp_forward.1} parent=1 // pred_check
      _
    $region19: #{mlp_forward.1} parent=1 // pred_check_branch
      %50 = sbr.rel (0) target = $region21
    $region20: #{mlp_forward.1} parent=1 // pred_region
      _
    $region21: #{mlp_forward.1} parent=1 // pred_fallthru
      _
    // Predicated region
    $region22: #{mlp_forward.1} parent=1 // pred_check
      _
    $region23: #{mlp_forward.1} parent=1 // pred_check_branch
      %52 = sbr.rel (0) target = $region25
    $region24: #{mlp_forward.1} parent=1 // pred_region
      %s54 = ssub.s32 4096, 4096
      %55 = vsyncadd [#allocation6], %s54
      %s56 = sshll.u32 [#allocation7], 4
      %s57 = int_to_ptr.vmem [resolvable:$true] %s56
      %62 = dma.hbm_to_vmem [thread:$0]  %s5, 4096, %s57, [#allocation6], 64, 64, 4
    $region25: #{mlp_forward.1} parent=1 // pred_fallthru
      _
    // Predicated region
    $region26: #{mlp_forward.1} parent=1 // pred_check
      _
    $region27: #{mlp_forward.1} parent=1 // pred_check_branch
      %64 = sbr.rel (0) target = $region29
    $region28: #{mlp_forward.1} parent=1 // pred_region
      _
    $region29: #{mlp_forward.1} parent=1 // pred_fallthru
      _
    // Predicated region
    $region30: #{mlp_forward.1} parent=1 // pred_check
      _
    $region31: #{mlp_forward.1} parent=1 // pred_check_branch
      %66 = sbr.rel (0) target = $region33
    $region32: #{mlp_forward.1} parent=1 // pred_region
      %s68 = ssub.s32 1024, 1024
      %69 = vsyncadd [#allocation9], %s68
      %s70 = sshll.u32 [#allocation8], 4
      %s71 = int_to_ptr.vmem [resolvable:$true] %s70
      %76 = dma.hbm_to_vmem [thread:$0]  %s7, 1024, %s71, [#allocation9], 64, 64, 4
    $region33: #{mlp_forward.1} parent=1 // pred_fallthru
      _
    // Predicated region
    $region34: #{mlp_forward.1} parent=1 // pred_check
      _
    $region35: #{mlp_forward.1} parent=1 // pred_check_branch
      %78 = sbr.rel (0) target = $region37
    $region36: #{mlp_forward.1} parent=1 // pred_region
      _
    $region37: #{mlp_forward.1} parent=1 // pred_fallthru
      _
    // Predicated region
    $region38: #{mlp_forward.1} parent=1 // pred_check
      _
    $region39: #{mlp_forward.1} parent=1 // pred_check_branch
      %80 = sbr.rel (0) target = $region41
    $region40: #{mlp_forward.1} parent=1 // pred_region
      _
    $region41: #{mlp_forward.1} parent=1 // pred_fallthru
      _
    // Predicated region
    $region42: #{mlp_forward.1} parent=1 // pred_check
      _
    $region43: #{mlp_forward.1} parent=1 // pred_check_branch
      %82 = sbr.rel (0) target = $region45
    $region44: #{mlp_forward.1} parent=1 // pred_region
      _
    $region45: #{mlp_forward.1} parent=1 // pred_fallthru
      _
    // Predicated region
    $region46: #{mlp_forward.1} parent=1 // pred_check
      _
    $region47: #{mlp_forward.1} parent=1 // pred_check_branch
      %84 = sbr.rel (0) target = $region49
    $region48: #{mlp_forward.1} parent=1 // pred_region
      %85 = dma.done [#allocation4], 1024
    $region49: #{mlp_forward.1} parent=1 // pred_fallthru
      _
    // Predicated region
    $region50: #{mlp_forward.1} parent=1 // pred_check
      _
    $region51: #{mlp_forward.1} parent=1 // pred_check_branch
      %87 = sbr.rel (0) target = $region53
    $region52: #{mlp_forward.1} parent=1 // pred_region
      %88 = dma.done [#allocation6], 4096
    $region53: #{mlp_forward.1} parent=1 // pred_fallthru
      _
    // Predicated region
    $region54: #{mlp_forward.1} parent=1 // pred_check
      _
    $region55: #{mlp_forward.1} parent=1 // pred_check_branch
      %90 = sbr.rel (0) target = $region57
    $region56: #{mlp_forward.1} parent=1 // pred_region
      %91 = dma.done [#allocation6], 4096
    $region57: #{mlp_forward.1} parent=1 // pred_fallthru
      _
    // Predicated region
    $region58: #{mlp_forward.1} parent=1 // pred_check
      _
    $region59: #{mlp_forward.1} parent=1 // pred_check_branch
      %93 = sbr.rel (0) target = $region61
    $region60: #{mlp_forward.1} parent=1 // pred_region
      %94 = dma.done [#allocation9], 1024
    $region61: #{mlp_forward.1} parent=1 // pred_fallthru
      _
    %v96 = vld [vmem:[%s0] sm:$0xf]
    %v97 = vld [vmem:[%s0 + $0x4] sm:$0xf]
    %v98 = vld [vmem:[#allocation3] sm:$0xf]
    %v99 = vld [vmem:[#allocation3 + $0x4] sm:$0xf]
    %v100 = vld [vmem:[#allocation3 + $0x8] sm:$0xf]
    %v101 = vld [vmem:[#allocation3 + $0xc] sm:$0xf]
    %v102 = vld [vmem:[#allocation3 + $0x10] sm:$0xf]
    %v103 = vld [vmem:[#allocation3 + $0x14] sm:$0xf]
    %v104 = vld [vmem:[#allocation3 + $0x18] sm:$0xf]
    %v105 = vld [vmem:[#allocation3 + $0x1c] sm:$0xf]
    %v106 = vld [vmem:[#allocation3 + $0x20] sm:$0xf]
    %v107 = vld [vmem:[#allocation3 + $0x24] sm:$0xf]
    %v108 = vld [vmem:[#allocation3 + $0x28] sm:$0xf]
    %v109 = vld [vmem:[#allocation3 + $0x2c] sm:$0xf]
    %v110 = vld [vmem:[#allocation3 + $0x30] sm:$0xf]
    %v111 = vld [vmem:[#allocation3 + $0x34] sm:$0xf]
    %v112 = vld [vmem:[#allocation3 + $0x38] sm:$0xf]
    %v113 = vld [vmem:[#allocation3 + $0x3c] sm:$0xf]
    %v114 = vld [vmem:[%s2] sm:$0x1]
    %v116 = vlaneseq
    %v117 = vshrl.u32 %v116, 7
    %v118 = vsub.s32 0, %v117
    %v119 = vrot.slane %v114, %v118
    %v123 = vunpack.c.l.b16 %v96
    %v124 = vunpack.c.l.b16 %v97
    %v125 = vpack.c.b16 %v124, %v123
    %v143 = vunpack.c.l.b16 %v98
    %v144 = vunpack.c.l.b16 %v99
    %v145 = vunpack.c.l.b16 %v100
    %v146 = vunpack.c.l.b16 %v101
    %v147 = vunpack.c.l.b16 %v102
    %v148 = vunpack.c.l.b16 %v103
    %v149 = vunpack.c.l.b16 %v104
    %v150 = vunpack.c.l.b16 %v105
    %v151 = vunpack.c.l.b16 %v106
    %v152 = vunpack.c.l.b16 %v107
    %v153 = vunpack.c.l.b16 %v108
    %v154 = vunpack.c.l.b16 %v109
    %v155 = vunpack.c.l.b16 %v110
    %v156 = vunpack.c.l.b16 %v111
    %v157 = vunpack.c.l.b16 %v112
    %v158 = vunpack.c.l.b16 %v113
    %v159 = vpack.c.b16 %v144, %v143
    %v160 = vpack.c.b16 %v146, %v145
    %v161 = vpack.c.b16 %v148, %v147
    %v162 = vpack.c.b16 %v150, %v149
    %v163 = vpack.c.b16 %v152, %v151
    %v164 = vpack.c.b16 %v154, %v153
    %v165 = vpack.c.b16 %v156, %v155
    %v166 = vpack.c.b16 %v158, %v157
    %175 = vmatprep.subr.bf16.mxu0 0
    %176 = vmatpush1.bf16.msra.mxu0 %v166
    %177 = vmatprep.subr.bf16.mxu0 0
    %178 = vmatpush1.bf16.msra.mxu0 %v165
    %179 = vmatprep.subr.bf16.mxu0 0
    %180 = vmatpush1.bf16.msra.mxu0 %v164
    %181 = vmatprep.subr.bf16.mxu0 0
    %182 = vmatpush1.bf16.msra.mxu0 %v163
    %183 = vmatprep.subr.bf16.mxu0 0
    %184 = vmatpush1.bf16.msra.mxu0 %v162
    %185 = vmatprep.subr.bf16.mxu0 0
    %186 = vmatpush1.bf16.msra.mxu0 %v161
    %187 = vmatprep.subr.bf16.mxu0 0
    %188 = vmatpush1.bf16.msra.mxu0 %v160
    %189 = vmatprep.subr.bf16.mxu0 0
    %190 = vmatpush1.bf16.msra.mxu0 %v159
    %191 = vmatprep.subr.bf16.mxu0 0
    %192 = vmatpush2.bf16.msra.mxu0 0
    %193 = vmatprep.subr.bf16.mxu0 0
    %194 = vmatpush2.bf16.msra.mxu0 0
    %195 = vmatprep.subr.bf16.mxu0 0
    %196 = vmatpush2.bf16.msra.mxu0 0
    %197 = vmatprep.subr.bf16.mxu0 0
    %198 = vmatpush2.bf16.msra.mxu0 0
    %199 = vmatprep.subr.bf16.mxu0 0
    %200 = vmatpush2.bf16.msra.mxu0 0
    %201 = vmatprep.subr.bf16.mxu0 0
    %202 = vmatpush2.bf16.msra.mxu0 0
    %203 = vmatprep.subr.bf16.mxu0 0
    %204 = vmatpush2.bf16.msra.mxu0 0
    %205 = vmatprep.subr.bf16.mxu0 0
    %206 = vmatpush2.bf16.msra.mxu0 0
    %207 = vmatprep.mubr.bf16.mxu0 0
    %208 = vmatmul.mubr.bf16.gmra.mxu0 %v125
    %v209 = vpop.f32.mrf.mxu0
    %v210 = vadd.f32 %v119, %v209
    %v211 = vpop.f32.mrf.mxu0
    %v212 = vpop.f32.mrf.mxu0
    %v213 = vadd.f32 %v119, %v212
    %v214 = vpop.f32.mrf.mxu0
    %215 = vdwg.mxu0
    %v216 = vmax.f32 %v210, 0.0
    %v217 = vmax.f32 %v213, 0.0
    %v218 = vpack.c.bf16 %v217, %v216
    %v219 = vld [vmem:[#allocation5] sm:$0xff]
    %v220 = vld [vmem:[#allocation5 + $0x8] sm:$0xff]
    %v221 = vld [vmem:[#allocation5 + $0x10] sm:$0xff]
    %v222 = vld [vmem:[#allocation5 + $0x18] sm:$0xff]
    %v223 = vld [vmem:[#allocation5 + $0x20] sm:$0xff]
    %v224 = vld [vmem:[#allocation5 + $0x28] sm:$0xff]
    %v225 = vld [vmem:[#allocation5 + $0x30] sm:$0xff]
    %v226 = vld [vmem:[#allocation5 + $0x38] sm:$0xff]
    %v227 = vld [vmem:[#allocation5 + $0x40] sm:$0xff]
    %v228 = vld [vmem:[#allocation5 + $0x48] sm:$0xff]
    %v229 = vld [vmem:[#allocation5 + $0x50] sm:$0xff]
    %v230 = vld [vmem:[#allocation5 + $0x58] sm:$0xff]
    %v231 = vld [vmem:[#allocation5 + $0x60] sm:$0xff]
    %v232 = vld [vmem:[#allocation5 + $0x68] sm:$0xff]
    %v233 = vld [vmem:[#allocation5 + $0x70] sm:$0xff]
    %v234 = vld [vmem:[#allocation5 + $0x78] sm:$0xff]
    %v235 = vld [vmem:[#allocation5 + $0x80] sm:$0xff]
    %v236 = vld [vmem:[#allocation5 + $0x88] sm:$0xff]
    %v237 = vld [vmem:[#allocation5 + $0x90] sm:$0xff]
    %v238 = vld [vmem:[#allocation5 + $0x98] sm:$0xff]
    %v239 = vld [vmem:[#allocation5 + $0xa0] sm:$0xff]
    %v240 = vld [vmem:[#allocation5 + $0xa8] sm:$0xff]
    %v241 = vld [vmem:[#allocation5 + $0xb0] sm:$0xff]
    %v242 = vld [vmem:[#allocation5 + $0xb8] sm:$0xff]
    %v243 = vld [vmem:[#allocation5 + $0xc0] sm:$0xff]
    %v244 = vld [vmem:[#allocation5 + $0xc8] sm:$0xff]
    %v245 = vld [vmem:[#allocation5 + $0xd0] sm:$0xff]
    %v246 = vld [vmem:[#allocation5 + $0xd8] sm:$0xff]
    %v247 = vld [vmem:[#allocation5 + $0xe0] sm:$0xff]
    %v248 = vld [vmem:[#allocation5 + $0xe8] sm:$0xff]
    %v249 = vld [vmem:[#allocation5 + $0xf0] sm:$0xff]
    %v250 = vld [vmem:[#allocation5 + $0xf8] sm:$0xff]
    %v251 = vld [vmem:[%s4] sm:$0xf]
    %v253 = vlaneseq
    %v254 = vshrl.u32 %v253, 7
    %v255 = vsub.s32 0, %v254
    %v256 = vrot.slane %v251, %v255
    %v257 = vlaneseq
    %v258 = vshrl.u32 %v257, 7
    %v259 = vsub.s32 1, %v258
    %v260 = vrot.slane %v251, %v259
    %v261 = vlaneseq
    %v262 = vshrl.u32 %v261, 7
    %v263 = vsub.s32 2, %v262
    %v264 = vrot.slane %v251, %v263
    %v265 = vlaneseq
    %v266 = vshrl.u32 %v265, 7
    %v267 = vsub.s32 3, %v266
    %v268 = vrot.slane %v251, %v267
    %v305 = vunpack.c.l.b16 %v219
    %v306 = vunpack.c.h.b16 %v219
    %v307 = vunpack.c.l.b16 %v220
    %v308 = vunpack.c.h.b16 %v220
    %v309 = vunpack.c.l.b16 %v221
    %v310 = vunpack.c.h.b16 %v221
    %v311 = vunpack.c.l.b16 %v222
    %v312 = vunpack.c.h.b16 %v222
    %v313 = vunpack.c.l.b16 %v223
    %v314 = vunpack.c.h.b16 %v223
    %v315 = vunpack.c.l.b16 %v224
    %v316 = vunpack.c.h.b16 %v224
    %v317 = vunpack.c.l.b16 %v225
    %v318 = vunpack.c.h.b16 %v225
    %v319 = vunpack.c.l.b16 %v226
    %v320 = vunpack.c.h.b16 %v226
    %v321 = vunpack.c.l.b16 %v227
    %v322 = vunpack.c.h.b16 %v227
    %v323 = vunpack.c.l.b16 %v228
    %v324 = vunpack.c.h.b16 %v228
    %v325 = vunpack.c.l.b16 %v229
    %v326 = vunpack.c.h.b16 %v229
    %v327 = vunpack.c.l.b16 %v230
    %v328 = vunpack.c.h.b16 %v230
    %v329 = vunpack.c.l.b16 %v231
    %v330 = vunpack.c.h.b16 %v231
    %v331 = vunpack.c.l.b16 %v232
    %v332 = vunpack.c.h.b16 %v232
    %v333 = vunpack.c.l.b16 %v233
    %v334 = vunpack.c.h.b16 %v233
    %v335 = vunpack.c.l.b16 %v234
    %v336 = vunpack.c.h.b16 %v234
    %v337 = vunpack.c.l.b16 %v235
    %v338 = vunpack.c.h.b16 %v235
    %v339 = vunpack.c.l.b16 %v236
    %v340 = vunpack.c.h.b16 %v236
    %v341 = vunpack.c.l.b16 %v237
    %v342 = vunpack.c.h.b16 %v237
    %v343 = vunpack.c.l.b16 %v238
    %v344 = vunpack.c.h.b16 %v238
    %v345 = vunpack.c.l.b16 %v239
    %v346 = vunpack.c.h.b16 %v239
    %v347 = vunpack.c.l.b16 %v240
    %v348 = vunpack.c.h.b16 %v240
    %v349 = vunpack.c.l.b16 %v241
    %v350 = vunpack.c.h.b16 %v241
    %v351 = vunpack.c.l.b16 %v242
    %v352 = vunpack.c.h.b16 %v242
    %v353 = vunpack.c.l.b16 %v243
    %v354 = vunpack.c.h.b16 %v243
    %v355 = vunpack.c.l.b16 %v244
    %v356 = vunpack.c.h.b16 %v244
    %v357 = vunpack.c.l.b16 %v245
    %v358 = vunpack.c.h.b16 %v245
    %v359 = vunpack.c.l.b16 %v246
    %v360 = vunpack.c.h.b16 %v246
    %v361 = vunpack.c.l.b16 %v247
    %v362 = vunpack.c.h.b16 %v247
    %v363 = vunpack.c.l.b16 %v248
    %v364 = vunpack.c.h.b16 %v248
    %v365 = vunpack.c.l.b16 %v249
    %v366 = vunpack.c.h.b16 %v249
    %v367 = vunpack.c.l.b16 %v250
    %v368 = vunpack.c.h.b16 %v250
    %v369 = vpack.c.b16 %v309, %v305
    %v370 = vpack.c.b16 %v310, %v306
    %v371 = vpack.c.b16 %v311, %v307
    %v372 = vpack.c.b16 %v312, %v308
    %v373 = vpack.c.b16 %v317, %v313
    %v374 = vpack.c.b16 %v318, %v314
    %v375 = vpack.c.b16 %v319, %v315
    %v376 = vpack.c.b16 %v320, %v316
    %v377 = vpack.c.b16 %v325, %v321
    %v378 = vpack.c.b16 %v326, %v322
    %v379 = vpack.c.b16 %v327, %v323
    %v380 = vpack.c.b16 %v328, %v324
    %v381 = vpack.c.b16 %v333, %v329
    %v382 = vpack.c.b16 %v334, %v330
    %v383 = vpack.c.b16 %v335, %v331
    %v384 = vpack.c.b16 %v336, %v332
    %v385 = vpack.c.b16 %v341, %v337
    %v386 = vpack.c.b16 %v342, %v338
    %v387 = vpack.c.b16 %v343, %v339
    %v388 = vpack.c.b16 %v344, %v340
    %v389 = vpack.c.b16 %v349, %v345
    %v390 = vpack.c.b16 %v350, %v346
    %v391 = vpack.c.b16 %v351, %v347
    %v392 = vpack.c.b16 %v352, %v348
    %v393 = vpack.c.b16 %v357, %v353
    %v394 = vpack.c.b16 %v358, %v354
    %v395 = vpack.c.b16 %v359, %v355
    %v396 = vpack.c.b16 %v360, %v356
    %v397 = vpack.c.b16 %v365, %v361
    %v398 = vpack.c.b16 %v366, %v362
    %v399 = vpack.c.b16 %v367, %v363
    %v400 = vpack.c.b16 %v368, %v364
    %433 = vmatprep.subr.bf16.mxu0 %v398
    %434 = vmatpush1.bf16.msra.mxu0 %v397
    %435 = vmatprep.subr.bf16.mxu0 %v394
    %436 = vmatpush1.bf16.msra.mxu0 %v393
    %437 = vmatprep.subr.bf16.mxu0 %v390
    %438 = vmatpush1.bf16.msra.mxu0 %v389
    %439 = vmatprep.subr.bf16.mxu0 %v386
    %440 = vmatpush1.bf16.msra.mxu0 %v385
    %441 = vmatprep.subr.bf16.mxu0 %v382
    %442 = vmatpush1.bf16.msra.mxu0 %v381
    %443 = vmatprep.subr.bf16.mxu0 %v378
    %444 = vmatpush1.bf16.msra.mxu0 %v377
    %445 = vmatprep.subr.bf16.mxu0 %v374
    %446 = vmatpush1.bf16.msra.mxu0 %v373
    %447 = vmatprep.subr.bf16.mxu0 %v370
    %448 = vmatpush1.bf16.msra.mxu0 %v369
    %449 = vmatprep.subr.bf16.mxu0 0
    %450 = vmatpush2.bf16.msra.mxu0 0
    %451 = vmatprep.subr.bf16.mxu0 0
    %452 = vmatpush2.bf16.msra.mxu0 0
    %453 = vmatprep.subr.bf16.mxu0 0
    %454 = vmatpush2.bf16.msra.mxu0 0
    %455 = vmatprep.subr.bf16.mxu0 0
    %456 = vmatpush2.bf16.msra.mxu0 0
    %457 = vmatprep.subr.bf16.mxu0 0
    %458 = vmatpush2.bf16.msra.mxu0 0
    %459 = vmatprep.subr.bf16.mxu0 0
    %460 = vmatpush2.bf16.msra.mxu0 0
    %461 = vmatprep.subr.bf16.mxu0 0
    %462 = vmatpush2.bf16.msra.mxu0 0
    %463 = vmatprep.subr.bf16.mxu0 0
    %464 = vmatpush2.bf16.msra.mxu0 0
    %465 = vmatprep.mubr.bf16.mxu0 0
    %466 = vmatmul.mubr.bf16.gmra.mxu0 %v218
    %v467 = vpop.f32.mrf.mxu0
    %v468 = vadd.f32 %v256, %v467
    %v469 = vpop.f32.mrf.mxu0
    %v470 = vadd.f32 %v260, %v469
    %v471 = vpop.f32.mrf.mxu0
    %v472 = vadd.f32 %v256, %v471
    %v473 = vpop.f32.mrf.mxu0
    %v474 = vadd.f32 %v260, %v473
    %475 = vdwg.mxu0
    %476 = vmatprep.subr.bf16.mxu0 %v400
    %477 = vmatpush1.bf16.msra.mxu0 %v399
    %478 = vmatprep.subr.bf16.mxu0 %v396
    %479 = vmatpush1.bf16.msra.mxu0 %v395
    %480 = vmatprep.subr.bf16.mxu0 %v392
    %481 = vmatpush1.bf16.msra.mxu0 %v391
    %482 = vmatprep.subr.bf16.mxu0 %v388
    %483 = vmatpush1.bf16.msra.mxu0 %v387
    %484 = vmatprep.subr.bf16.mxu0 %v384
    %485 = vmatpush1.bf16.msra.mxu0 %v383
    %486 = vmatprep.subr.bf16.mxu0 %v380
    %487 = vmatpush1.bf16.msra.mxu0 %v379
    %488 = vmatprep.subr.bf16.mxu0 %v376
    %489 = vmatpush1.bf16.msra.mxu0 %v375
    %490 = vmatprep.subr.bf16.mxu0 %v372
    %491 = vmatpush1.bf16.msra.mxu0 %v371
    %492 = vmatprep.subr.bf16.mxu0 0
    %493 = vmatpush2.bf16.msra.mxu0 0
    %494 = vmatprep.subr.bf16.mxu0 0
    %495 = vmatpush2.bf16.msra.mxu0 0
    %496 = vmatprep.subr.bf16.mxu0 0
    %497 = vmatpush2.bf16.msra.mxu0 0
    %498 = vmatprep.subr.bf16.mxu0 0
    %499 = vmatpush2.bf16.msra.mxu0 0
    %500 = vmatprep.subr.bf16.mxu0 0
    %501 = vmatpush2.bf16.msra.mxu0 0
    %502 = vmatprep.subr.bf16.mxu0 0
    %503 = vmatpush2.bf16.msra.mxu0 0
    %504 = vmatprep.subr.bf16.mxu0 0
    %505 = vmatpush2.bf16.msra.mxu0 0
    %506 = vmatprep.subr.bf16.mxu0 0
    %507 = vmatpush2.bf16.msra.mxu0 0
    %508 = vmatprep.mubr.bf16.mxu0 0
    %509 = vmatmul.mubr.bf16.gmra.mxu0 %v218
    %v510 = vpop.f32.mrf.mxu0
    %v511 = vadd.f32 %v264, %v510
    %v512 = vpop.f32.mrf.mxu0
    %v513 = vadd.f32 %v268, %v512
    %v514 = vpop.f32.mrf.mxu0
    %v515 = vadd.f32 %v264, %v514
    %v516 = vpop.f32.mrf.mxu0
    %v517 = vadd.f32 %v268, %v516
    %518 = vdwg.mxu0
    %v519 = vmax.f32 %v468, 0.0
    %v520 = vmax.f32 %v470, 0.0
    %v521 = vmax.f32 %v511, 0.0
    %v522 = vmax.f32 %v513, 0.0
    %v523 = vmax.f32 %v472, 0.0
    %v524 = vmax.f32 %v474, 0.0
    %v525 = vmax.f32 %v515, 0.0
    %v526 = vmax.f32 %v517, 0.0
    %v527 = vpack.c.bf16 %v523, %v519
    %v528 = vpack.c.bf16 %v524, %v520
    %v529 = vpack.c.bf16 %v525, %v521
    %v530 = vpack.c.bf16 %v526, %v522
    %v531 = vld [vmem:[#allocation7] sm:$0xf]
    %v532 = vld [vmem:[#allocation7 + $0x4] sm:$0xf]
    %v533 = vld [vmem:[#allocation7 + $0x8] sm:$0xf]
    %v534 = vld [vmem:[#allocation7 + $0xc] sm:$0xf]
    %v535 = vld [vmem:[#allocation7 + $0x10] sm:$0xf]
    %v536 = vld [vmem:[#allocation7 + $0x14] sm:$0xf]
    %v537 = vld [vmem:[#allocation7 + $0x18] sm:$0xf]
    %v538 = vld [vmem:[#allocation7 + $0x1c] sm:$0xf]
    %v539 = vld [vmem:[#allocation7 + $0x20] sm:$0xf]
    %v540 = vld [vmem:[#allocation7 + $0x24] sm:$0xf]
    %v541 = vld [vmem:[#allocation7 + $0x28] sm:$0xf]
    %v542 = vld [vmem:[#allocation7 + $0x2c] sm:$0xf]
    %v543 = vld [vmem:[#allocation7 + $0x30] sm:$0xf]
    %v544 = vld [vmem:[#allocation7 + $0x34] sm:$0xf]
    %v545 = vld [vmem:[#allocation7 + $0x38] sm:$0xf]
    %v546 = vld [vmem:[#allocation7 + $0x3c] sm:$0xf]
    %v547 = vld [vmem:[#allocation7 + $0x40] sm:$0xf]
    %v548 = vld [vmem:[#allocation7 + $0x44] sm:$0xf]
    %v549 = vld [vmem:[#allocation7 + $0x48] sm:$0xf]
    %v550 = vld [vmem:[#allocation7 + $0x4c] sm:$0xf]
    %v551 = vld [vmem:[#allocation7 + $0x50] sm:$0xf]
    %v552 = vld [vmem:[#allocation7 + $0x54] sm:$0xf]
    %v553 = vld [vmem:[#allocation7 + $0x58] sm:$0xf]
    %v554 = vld [vmem:[#allocation7 + $0x5c] sm:$0xf]
    %v555 = vld [vmem:[#allocation7 + $0x60] sm:$0xf]
    %v556 = vld [vmem:[#allocation7 + $0x64] sm:$0xf]
    %v557 = vld [vmem:[#allocation7 + $0x68] sm:$0xf]
    %v558 = vld [vmem:[#allocation7 + $0x6c] sm:$0xf]
    %v559 = vld [vmem:[#allocation7 + $0x70] sm:$0xf]
    %v560 = vld [vmem:[#allocation7 + $0x74] sm:$0xf]
    %v561 = vld [vmem:[#allocation7 + $0x78] sm:$0xf]
    %v562 = vld [vmem:[#allocation7 + $0x7c] sm:$0xf]
    %v563 = vld [vmem:[#allocation7 + $0x80] sm:$0xf]
    %v564 = vld [vmem:[#allocation7 + $0x84] sm:$0xf]
    %v565 = vld [vmem:[#allocation7 + $0x88] sm:$0xf]
    %v566 = vld [vmem:[#allocation7 + $0x8c] sm:$0xf]
    %v567 = vld [vmem:[#allocation7 + $0x90] sm:$0xf]
    %v568 = vld [vmem:[#allocation7 + $0x94] sm:$0xf]
    %v569 = vld [vmem:[#allocation7 + $0x98] sm:$0xf]
    %v570 = vld [vmem:[#allocation7 + $0x9c] sm:$0xf]
    %v571 = vld [vmem:[#allocation7 + $0xa0] sm:$0xf]
    %v572 = vld [vmem:[#allocation7 + $0xa4] sm:$0xf]
    %v573 = vld [vmem:[#allocation7 + $0xa8] sm:$0xf]
    %v574 = vld [vmem:[#allocation7 + $0xac] sm:$0xf]
    %v575 = vld [vmem:[#allocation7 + $0xb0] sm:$0xf]
    %v576 = vld [vmem:[#allocation7 + $0xb4] sm:$0xf]
    %v577 = vld [vmem:[#allocation7 + $0xb8] sm:$0xf]
    %v578 = vld [vmem:[#allocation7 + $0xbc] sm:$0xf]
    %v579 = vld [vmem:[#allocation7 + $0xc0] sm:$0xf]
    %v580 = vld [vmem:[#allocation7 + $0xc4] sm:$0xf]
    %v581 = vld [vmem:[#allocation7 + $0xc8] sm:$0xf]
    %v582 = vld [vmem:[#allocation7 + $0xcc] sm:$0xf]
    %v583 = vld [vmem:[#allocation7 + $0xd0] sm:$0xf]
    %v584 = vld [vmem:[#allocation7 + $0xd4] sm:$0xf]
    %v585 = vld [vmem:[#allocation7 + $0xd8] sm:$0xf]
    %v586 = vld [vmem:[#allocation7 + $0xdc] sm:$0xf]
    %v587 = vld [vmem:[#allocation7 + $0xe0] sm:$0xf]
    %v588 = vld [vmem:[#allocation7 + $0xe4] sm:$0xf]
    %v589 = vld [vmem:[#allocation7 + $0xe8] sm:$0xf]
    %v590 = vld [vmem:[#allocation7 + $0xec] sm:$0xf]
    %v591 = vld [vmem:[#allocation7 + $0xf0] sm:$0xf]
    %v592 = vld [vmem:[#allocation7 + $0xf4] sm:$0xf]
    %v593 = vld [vmem:[#allocation7 + $0xf8] sm:$0xf]
    %v594 = vld [vmem:[#allocation7 + $0xfc] sm:$0xf]
    %v595 = vld [vmem:[%s6] sm:$0x1]
    %v597 = vlaneseq
    %v598 = vshrl.u32 %v597, 7
    %v599 = vsub.s32 0, %v598
    %v600 = vrot.slane %v595, %v599
    %v666 = vunpack.c.l.b16 %v531
    %v667 = vunpack.c.l.b16 %v532
    %v668 = vunpack.c.l.b16 %v533
    %v669 = vunpack.c.l.b16 %v534
    %v670 = vunpack.c.l.b16 %v535
    %v671 = vunpack.c.l.b16 %v536
    %v672 = vunpack.c.l.b16 %v537
    %v673 = vunpack.c.l.b16 %v538
    %v674 = vunpack.c.l.b16 %v539
    %v675 = vunpack.c.l.b16 %v540
    %v676 = vunpack.c.l.b16 %v541
    %v677 = vunpack.c.l.b16 %v542
    %v678 = vunpack.c.l.b16 %v543
    %v679 = vunpack.c.l.b16 %v544
    %v680 = vunpack.c.l.b16 %v545
    %v681 = vunpack.c.l.b16 %v546
    %v682 = vunpack.c.l.b16 %v547
    %v683 = vunpack.c.l.b16 %v548
    %v684 = vunpack.c.l.b16 %v549
    %v685 = vunpack.c.l.b16 %v550
    %v686 = vunpack.c.l.b16 %v551
    %v687 = vunpack.c.l.b16 %v552
    %v688 = vunpack.c.l.b16 %v553
    %v689 = vunpack.c.l.b16 %v554
    %v690 = vunpack.c.l.b16 %v555
    %v691 = vunpack.c.l.b16 %v556
    %v692 = vunpack.c.l.b16 %v557
    %v693 = vunpack.c.l.b16 %v558
    %v694 = vunpack.c.l.b16 %v559
    %v695 = vunpack.c.l.b16 %v560
    %v696 = vunpack.c.l.b16 %v561
    %v697 = vunpack.c.l.b16 %v562
    %v698 = vunpack.c.l.b16 %v563
    %v699 = vunpack.c.l.b16 %v564
    %v700 = vunpack.c.l.b16 %v565
    %v701 = vunpack.c.l.b16 %v566
    %v702 = vunpack.c.l.b16 %v567
    %v703 = vunpack.c.l.b16 %v568
    %v704 = vunpack.c.l.b16 %v569
    %v705 = vunpack.c.l.b16 %v570
    %v706 = vunpack.c.l.b16 %v571
    %v707 = vunpack.c.l.b16 %v572
    %v708 = vunpack.c.l.b16 %v573
    %v709 = vunpack.c.l.b16 %v574
    %v710 = vunpack.c.l.b16 %v575
    %v711 = vunpack.c.l.b16 %v576
    %v712 = vunpack.c.l.b16 %v577
    %v713 = vunpack.c.l.b16 %v578
    %v714 = vunpack.c.l.b16 %v579
    %v715 = vunpack.c.l.b16 %v580
    %v716 = vunpack.c.l.b16 %v581
    %v717 = vunpack.c.l.b16 %v582
    %v718 = vunpack.c.l.b16 %v583
    %v719 = vunpack.c.l.b16 %v584
    %v720 = vunpack.c.l.b16 %v585
    %v721 = vunpack.c.l.b16 %v586
    %v722 = vunpack.c.l.b16 %v587
    %v723 = vunpack.c.l.b16 %v588
    %v724 = vunpack.c.l.b16 %v589
    %v725 = vunpack.c.l.b16 %v590
    %v726 = vunpack.c.l.b16 %v591
    %v727 = vunpack.c.l.b16 %v592
    %v728 = vunpack.c.l.b16 %v593
    %v729 = vunpack.c.l.b16 %v594
    %v730 = vpack.c.b16 %v667, %v666
    %v731 = vpack.c.b16 %v669, %v668
    %v732 = vpack.c.b16 %v671, %v670
    %v733 = vpack.c.b16 %v673, %v672
    %v734 = vpack.c.b16 %v675, %v674
    %v735 = vpack.c.b16 %v677, %v676
    %v736 = vpack.c.b16 %v679, %v678
    %v737 = vpack.c.b16 %v681, %v680
    %v738 = vpack.c.b16 %v683, %v682
    %v739 = vpack.c.b16 %v685, %v684
    %v740 = vpack.c.b16 %v687, %v686
    %v741 = vpack.c.b16 %v689, %v688
    %v742 = vpack.c.b16 %v691, %v690
    %v743 = vpack.c.b16 %v693, %v692
    %v744 = vpack.c.b16 %v695, %v694
    %v745 = vpack.c.b16 %v697, %v696
    %v746 = vpack.c.b16 %v699, %v698
    %v747 = vpack.c.b16 %v701, %v700
    %v748 = vpack.c.b16 %v703, %v702
    %v749 = vpack.c.b16 %v705, %v704
    %v750 = vpack.c.b16 %v707, %v706
    %v751 = vpack.c.b16 %v709, %v708
    %v752 = vpack.c.b16 %v711, %v710
    %v753 = vpack.c.b16 %v713, %v712
    %v754 = vpack.c.b16 %v715, %v714
    %v755 = vpack.c.b16 %v717, %v716
    %v756 = vpack.c.b16 %v719, %v718
    %v757 = vpack.c.b16 %v721, %v720
    %v758 = vpack.c.b16 %v723, %v722
    %v759 = vpack.c.b16 %v725, %v724
    %v760 = vpack.c.b16 %v727, %v726
    %v761 = vpack.c.b16 %v729, %v728
    %794 = vmatprep.subr.bf16.mxu0 0
    %795 = vmatpush1.bf16.msra.mxu0 %v737
    %796 = vmatprep.subr.bf16.mxu0 0
    %797 = vmatpush1.bf16.msra.mxu0 %v736
    %798 = vmatprep.subr.bf16.mxu0 0
    %799 = vmatpush1.bf16.msra.mxu0 %v735
    %800 = vmatprep.subr.bf16.mxu0 0
    %801 = vmatpush1.bf16.msra.mxu0 %v734
    %802 = vmatprep.subr.bf16.mxu0 0
    %803 = vmatpush1.bf16.msra.mxu0 %v733
    %804 = vmatprep.subr.bf16.mxu0 0
    %805 = vmatpush1.bf16.msra.mxu0 %v732
    %806 = vmatprep.subr.bf16.mxu0 0
    %807 = vmatpush1.bf16.msra.mxu0 %v731
    %808 = vmatprep.subr.bf16.mxu0 0
    %809 = vmatpush1.bf16.msra.mxu0 %v730
    %810 = vmatprep.subr.bf16.mxu0 0
    %811 = vmatpush2.bf16.msra.mxu0 %v745
    %812 = vmatprep.subr.bf16.mxu0 0
    %813 = vmatpush2.bf16.msra.mxu0 %v744
    %814 = vmatprep.subr.bf16.mxu0 0
    %815 = vmatpush2.bf16.msra.mxu0 %v743
    %816 = vmatprep.subr.bf16.mxu0 0
    %817 = vmatpush2.bf16.msra.mxu0 %v742
    %818 = vmatprep.subr.bf16.mxu0 0
    %819 = vmatpush2.bf16.msra.mxu0 %v741
    %820 = vmatprep.subr.bf16.mxu0 0
    %821 = vmatpush2.bf16.msra.mxu0 %v740
    %822 = vmatprep.subr.bf16.mxu0 0
    %823 = vmatpush2.bf16.msra.mxu0 %v739
    %824 = vmatprep.subr.bf16.mxu0 0
    %825 = vmatpush2.bf16.msra.mxu0 %v738
    %826 = vmatprep.mubr.bf16.mxu0 %v528
    %827 = vmatmul.mubr.bf16.gmra.mxu0 %v527
    %v828 = vpop.f32.mrf.mxu0
    %v829 = vadd.f32 %v600, %v828
    %v830 = vpop.f32.mrf.mxu0
    %v831 = vpop.f32.mrf.mxu0
    %v832 = vadd.f32 %v600, %v831
    %v833 = vpop.f32.mrf.mxu0
    %834 = vdwg.mxu0
    %835 = vmatprep.subr.bf16.mxu0 0
    %836 = vmatpush1.bf16.msra.mxu0 %v753
    %837 = vmatprep.subr.bf16.mxu0 0
    %838 = vmatpush1.bf16.msra.mxu0 %v752
    %839 = vmatprep.subr.bf16.mxu0 0
    %840 = vmatpush1.bf16.msra.mxu0 %v751
    %841 = vmatprep.subr.bf16.mxu0 0
    %842 = vmatpush1.bf16.msra.mxu0 %v750
    %843 = vmatprep.subr.bf16.mxu0 0
    %844 = vmatpush1.bf16.msra.mxu0 %v749
    %845 = vmatprep.subr.bf16.mxu0 0
    %846 = vmatpush1.bf16.msra.mxu0 %v748
    %847 = vmatprep.subr.bf16.mxu0 0
    %848 = vmatpush1.bf16.msra.mxu0 %v747
    %849 = vmatprep.subr.bf16.mxu0 0
    %850 = vmatpush1.bf16.msra.mxu0 %v746
    %851 = vmatprep.subr.bf16.mxu0 0
    %852 = vmatpush2.bf16.msra.mxu0 %v761
    %853 = vmatprep.subr.bf16.mxu0 0
    %854 = vmatpush2.bf16.msra.mxu0 %v760
    %855 = vmatprep.subr.bf16.mxu0 0
    %856 = vmatpush2.bf16.msra.mxu0 %v759
    %857 = vmatprep.subr.bf16.mxu0 0
    %858 = vmatpush2.bf16.msra.mxu0 %v758
    %859 = vmatprep.subr.bf16.mxu0 0
    %860 = vmatpush2.bf16.msra.mxu0 %v757
    %861 = vmatprep.subr.bf16.mxu0 0
    %862 = vmatpush2.bf16.msra.mxu0 %v756
    %863 = vmatprep.subr.bf16.mxu0 0
    %864 = vmatpush2.bf16.msra.mxu0 %v755
    %865 = vmatprep.subr.bf16.mxu0 0
    %866 = vmatpush2.bf16.msra.mxu0 %v754
    %867 = vmatprep.mubr.bf16.mxu0 %v530
    %868 = vmatmul.mubr.bf16.gmra.mxu0 %v529
    %v869 = vpop.f32.mrf.mxu0
    %v870 = vadd.f32 %v829, %v869
    %v871 = vpop.f32.mrf.mxu0
    %v872 = vpop.f32.mrf.mxu0
    %v873 = vadd.f32 %v832, %v872
    %v874 = vpop.f32.mrf.mxu0
    %875 = vdwg.mxu0
    %v876 = vmax.f32 %v870, 0.0
    %v877 = vmax.f32 %v873, 0.0
    %v878 = vpack.c.bf16 %v877, %v876
    %v879 = vld [vmem:[#allocation8] sm:$0xf]
    %v880 = vld [vmem:[#allocation8 + $0x4] sm:$0xf]
    %v881 = vld [vmem:[#allocation8 + $0x8] sm:$0xf]
    %v882 = vld [vmem:[#allocation8 + $0xc] sm:$0xf]
    %v883 = vld [vmem:[#allocation8 + $0x10] sm:$0xf]
    %v884 = vld [vmem:[#allocation8 + $0x14] sm:$0xf]
    %v885 = vld [vmem:[#allocation8 + $0x18] sm:$0xf]
    %v886 = vld [vmem:[#allocation8 + $0x1c] sm:$0xf]
    %v887 = vld [vmem:[#allocation8 + $0x20] sm:$0xf]
    %v888 = vld [vmem:[#allocation8 + $0x24] sm:$0xf]
    %v889 = vld [vmem:[#allocation8 + $0x28] sm:$0xf]
    %v890 = vld [vmem:[#allocation8 + $0x2c] sm:$0xf]
    %v891 = vld [vmem:[#allocation8 + $0x30] sm:$0xf]
    %v892 = vld [vmem:[#allocation8 + $0x34] sm:$0xf]
    %v893 = vld [vmem:[#allocation8 + $0x38] sm:$0xf]
    %v894 = vld [vmem:[#allocation8 + $0x3c] sm:$0xf]
    %v895 = vld [vmem:[%s8] sm:$0x1]
    %v897 = vlaneseq
    %v898 = vshrl.u32 %v897, 7
    %v899 = vsub.s32 0, %v898
    %v900 = vrot.slane %v895, %v899
    %v918 = vunpack.c.l.b16 %v879
    %v919 = vunpack.c.l.b16 %v880
    %v920 = vunpack.c.l.b16 %v881
    %v921 = vunpack.c.l.b16 %v882
    %v922 = vunpack.c.l.b16 %v883
    %v923 = vunpack.c.l.b16 %v884
    %v924 = vunpack.c.l.b16 %v885
    %v925 = vunpack.c.l.b16 %v886
    %v926 = vunpack.c.l.b16 %v887
    %v927 = vunpack.c.l.b16 %v888
    %v928 = vunpack.c.l.b16 %v889
    %v929 = vunpack.c.l.b16 %v890
    %v930 = vunpack.c.l.b16 %v891
    %v931 = vunpack.c.l.b16 %v892
    %v932 = vunpack.c.l.b16 %v893
    %v933 = vunpack.c.l.b16 %v894
    %v934 = vpack.c.b16 %v919, %v918
    %v935 = vpack.c.b16 %v921, %v920
    %v936 = vpack.c.b16 %v923, %v922
    %v937 = vpack.c.b16 %v925, %v924
    %v938 = vpack.c.b16 %v927, %v926
    %v939 = vpack.c.b16 %v929, %v928
    %v940 = vpack.c.b16 %v931, %v930
    %v941 = vpack.c.b16 %v933, %v932
    %950 = vmatprep.subr.bf16.mxu0 0
    %951 = vmatpush1.bf16.msra.mxu0 %v941
    %952 = vmatprep.subr.bf16.mxu0 0
    %953 = vmatpush1.bf16.msra.mxu0 %v940
    %954 = vmatprep.subr.bf16.mxu0 0
    %955 = vmatpush1.bf16.msra.mxu0 %v939
    %956 = vmatprep.subr.bf16.mxu0 0
    %957 = vmatpush1.bf16.msra.mxu0 %v938
    %958 = vmatprep.subr.bf16.mxu0 0
    %959 = vmatpush1.bf16.msra.mxu0 %v937
    %960 = vmatprep.subr.bf16.mxu0 0
    %961 = vmatpush1.bf16.msra.mxu0 %v936
    %962 = vmatprep.subr.bf16.mxu0 0
    %963 = vmatpush1.bf16.msra.mxu0 %v935
    %964 = vmatprep.subr.bf16.mxu0 0
    %965 = vmatpush1.bf16.msra.mxu0 %v934
    %966 = vmatprep.subr.bf16.mxu0 0
    %967 = vmatpush2.bf16.msra.mxu0 0
    %968 = vmatprep.subr.bf16.mxu0 0
    %969 = vmatpush2.bf16.msra.mxu0 0
    %970 = vmatprep.subr.bf16.mxu0 0
    %971 = vmatpush2.bf16.msra.mxu0 0
    %972 = vmatprep.subr.bf16.mxu0 0
    %973 = vmatpush2.bf16.msra.mxu0 0
    %974 = vmatprep.subr.bf16.mxu0 0
    %975 = vmatpush2.bf16.msra.mxu0 0
    %976 = vmatprep.subr.bf16.mxu0 0
    %977 = vmatpush2.bf16.msra.mxu0 0
    %978 = vmatprep.subr.bf16.mxu0 0
    %979 = vmatpush2.bf16.msra.mxu0 0
    %980 = vmatprep.subr.bf16.mxu0 0
    %981 = vmatpush2.bf16.msra.mxu0 0
    %982 = vmatprep.mubr.bf16.mxu0 0
    %983 = vmatmul.mubr.bf16.gmra.mxu0 %v878
    %v984 = vpop.f32.mrf.mxu0
    %v985 = vadd.f32 %v900, %v984
    %v986 = vpop.f32.mrf.mxu0
    %v987 = vpop.f32.mrf.mxu0
    %v988 = vadd.f32 %v900, %v987
    %v989 = vpop.f32.mrf.mxu0
    %990 = vdwg.mxu0
    %v991 = vmax.f32 %v985, 0.0
    %v992 = vmax.f32 %v988, 0.0
    %v993 = vld [vmem:[%s9] sm:$0x1]
    %v995 = vlaneseq
    %v996 = vshrl.u32 %v995, 7
    %v997 = vsub.s32 0, %v996
    %v998 = vrot.slane %v993, %v997
    %v1000 = vmul.f32 %v991, %v998
    %v1001 = vmul.f32 %v992, %v998
    %1002 = vadd.xlane.f32.xlu0 %v1000
    %v1003 = vpop.xlane.xlu0 %1002
    %1004 = vadd.xlane.f32.xlu0 %v1001
    %v1005 = vpop.xlane.xlu0 %1004
    %v1006 = vld [vmem:[#allocation2] sm:$0x1]
    %v1008 = vlaneseq
    %v1009 = vshrl.u32 %v1008, 7
    %v1010 = vsub.s32 0, %v1009
    %v1011 = vrot.slane %v1006, %v1010
    %v1013 = vadd.f32 %v1003, %v1011
    %v1014 = vadd.f32 %v1005, %v1011
    %vm1015 = vcmask 7168
    %1016 = vst.msk [vmem:[%s11] sm:$0xff] %vm1015, %v1013
    %1017 = vst.msk [vmem:[%s11 + $0x8] sm:$0xff] %vm1015, %v1014
    // Predicated region
    $region62: #{mlp_forward.1} parent=1 // pred_check
      _
    $region63: #{mlp_forward.1} parent=1 // pred_check_branch
      %1019 = sbr.rel (0) target = $region65
    $region64: #{mlp_forward.1} parent=1 // pred_region
      _
    $region65: #{mlp_forward.1} parent=1 // pred_fallthru
      _
    // Predicated region
    $region66: #{mlp_forward.1} parent=1 // pred_check
      _
    $region67: #{mlp_forward.1} parent=1 // pred_check_branch
      %1021 = sbr.rel (0) target = $region69
    $region68: #{mlp_forward.1} parent=1 // pred_region
      _
    $region69: #{mlp_forward.1} parent=1 // pred_fallthru
      _
    %1022 = vsyncpa [#allocation4], 1
    %1023 = vsyncpa [#allocation6], 1
    %1024 = vsyncpa [#allocation9], 1

</llo_original>
